<compile_context>
chip_gen: v7x
topology: tpu7x:2x2x1
jax: 0.10.0
libtpu: 0.0.40
codegen_flags: <defaults>
</compile_context>

<pallas_src>
import jax
import jax.numpy as jnp
import numpy as np
from jax.experimental import pallas as pl
from jax.experimental.pallas import tpu as pltpu  # noqa: F401  (kept for TPU-specific params if needed)

# ---- synthetic config (mirrors config.* in the PyTorch code) ---------------
VS = 50                                   # vocab size
LYR_L, LYR_E, LYR_K, LYR_Co = 16, 8, 3, 8 # config.lyrics.{L,E,K,Co}
M = 16                                    # config.M
MUS_L, MUS_K, MUS_Co = 8, 3, 8            # config.music.{L,K,Co}
NOTE_EMB, NOTE_SIZ = 8, 16                # config.note.{dim,size}
B = 2                                     # batch

NOTE_W = MUS_L * NOTE_SIZ                 # 128 — exactly one lane width
OUT_W = 2 * NOTE_W                        # 256 — note slab + (tempo, padding)


# --------------------------- fused kernel ------------------------------------
def translator_kernel(tok_ref, embed_ref, wconv_ref, bconv_ref, wlin_ref, blin_ref,
                      wd_ref, bd_ref, wup_ref, bup_ref, wc_ref, bc_ref,
                      wemb_ref, bemb_ref, out_ref):
    # tok_ref:   (B*L, 1) int32        embed_ref: (VS, E)
    # wconv_ref: (K*E, Co)             bconv_ref: (1, Co)
    # wlin_ref:  (Co, M)               blin_ref:  (1, M)
    # wd_ref:    (M, 1+Co)             bd_ref:    (1, 1+Co)
    # wup_ref:   (Lk, 1)               bup_ref:   (Lk, 1)
    # wc_ref:    (K*Co, Emb)           bc_ref:    (1, Emb)
    # wemb_ref:  (Emb, Siz)            bemb_ref:  (1, Siz)
    # out_ref:   (B, 256)

    # ---- nn.Embedding as a one-hot matmul (in-kernel gather) ----------------
    toks = tok_ref[...]                                              # (B*L, 1)
    vocab = jax.lax.broadcasted_iota(jnp.int32, (B * LYR_L, VS), 1)  # (B*L, VS)
    onehot = (toks == vocab).astype(jnp.float32)
    emb = jnp.dot(onehot, embed_ref[...],
                  preferred_element_type=jnp.float32)                # (B*L, E)

    # ---- encoder Conv2d(1, Co, (K, E)) as one im2col matmul over the batch --
    Lc = LYR_L - LYR_K + 1
    rows = []
    for b in range(B):                                               # static, B=2
        eb = emb[b * LYR_L:(b + 1) * LYR_L, :]                       # (L, E)
        rows.append(jnp.concatenate(
            [eb[k:k + Lc, :] for k in range(LYR_K)], axis=1))        # (Lc, K*E)
    im2col = jnp.concatenate(rows, axis=0)                           # (B*Lc, K*E)
    conv = jnp.dot(im2col, wconv_ref[...],
                   preferred_element_type=jnp.float32) + bconv_ref[...]  # (B*Lc, Co)

    # ---- MaxPool1d(L, ceil_mode=True): full-length max per batch ------------
    hid = jnp.concatenate(
        [jnp.max(conv[b * Lc:(b + 1) * Lc, :], axis=0, keepdims=True)
         for b in range(B)], axis=0)                                 # (B, Co)

    # ---- encoder Linear(Co, M) ----------------------------------------------
    enc = jnp.dot(hid, wlin_ref[...],
                  preferred_element_type=jnp.float32) + blin_ref[...]    # (B, M)

    # ---- decoder Linear(M, 1+Co); split tempo / hidden -----------------------
    hid_all = jnp.dot(enc, wd_ref[...],
                      preferred_element_type=jnp.float32) + bd_ref[...]  # (B, 1+Co)
    tempo = hid_all[:, 0:1]                                          # (B, 1)
    h = hid_all[:, 1:]                                               # (B, Co)

    # ---- unpool Linear(1, L+K-1) as a single outer-product matmul ------------
    Lk = MUS_L + MUS_K - 1
    Lm = MUS_L
    h_flat = jnp.concatenate([h[b:b + 1, :] for b in range(B)], axis=1)   # (1, B*Co)
    hid_up = jnp.dot(wup_ref[...], h_flat,
                     preferred_element_type=jnp.float32) + bup_ref[...]   # (Lk, B*Co)
    hid_up = jnp.maximum(hid_up, 0.0)                                # ReLU

    # ---- Conv1d(Co, Emb, K) as one im2col matmul over the batch --------------
    im2_list = []
    for b in range(B):
        hb = hid_up[:, b * MUS_Co:(b + 1) * MUS_Co]                  # (Lk, Co)
        im2_list.append(jnp.concatenate(
            [hb[k:k + Lm, :] for k in range(MUS_K)], axis=1))        # (Lm, K*Co)
    im2 = jnp.concatenate(im2_list, axis=0)                          # (B*Lm, K*Co)
    un = jnp.dot(im2, wc_ref[...],
                 preferred_element_type=jnp.float32) + bc_ref[...]   # (B*Lm, Emb)

    # ---- Linear(Emb, Siz) -----------------------------------------------------
    note = jnp.dot(un, wemb_ref[...],
                   preferred_element_type=jnp.float32) + bemb_ref[...]    # (B*Lm, Siz)

    # ---- pack everything into one lane-dense (B, 256) slab --------------------
    out_rows = []
    for b in range(B):
        note_row = jnp.concatenate(
            [note[b * Lm + l:b * Lm + l + 1, :] for l in range(Lm)], axis=1)   # (1, 128)
        tail = jnp.concatenate(
            [tempo[b:b + 1, :], jnp.zeros((1, NOTE_W - 1), jnp.float32)], axis=1)  # (1, 128)
        out_rows.append(jnp.concatenate([note_row, tail], axis=1))   # (1, 256)
    out_ref[...] = jnp.concatenate(out_rows, axis=0)                 # (B, 256)


# ------------------------------ wrapper --------------------------------------
def translator_forward(tokens, p):
    Bn = tokens.shape[0]
    tok2 = tokens.reshape(Bn * LYR_L, 1).astype(jnp.int32)
    wconv_flat = p['wconv'].reshape(LYR_K * LYR_E, LYR_Co)           # (K*E, Co)
    wc_flat = p['wc'].reshape(MUS_K * MUS_Co, NOTE_EMB)              # (K*Co, Emb)

    out = pl.pallas_call(
        translator_kernel,
        out_shape=jax.ShapeDtypeStruct((Bn, OUT_W), jnp.float32),
    )(tok2, p['embed'], wconv_flat, p['bconv'], p['wlin'], p['blin'],
      p['wd'], p['bd'], p['wup'], p['bup'], wc_flat, p['bc'],
      p['wemb'], p['bemb'])

    # match PyTorch output shapes: note (B*L_music, Siz), tempo (B,)
    note = out[:, :NOTE_W].reshape(Bn * MUS_L, NOTE_SIZ)
    tempo = out[:, NOTE_W]
    return note, tempo


# --------------------- pure-JAX reference (for checking) --------------------
def reference_forward(tokens, p):
    emb = jnp.take(p['embed'], tokens, axis=0)
    Bn, L, _ = emb.shape
    K, _, Co = p['wconv'].shape
    Lc = L - K + 1
    conv = jnp.zeros((Bn, Lc, Co), jnp.float32)
    for k in range(K):
        conv = conv + jnp.einsum('ble,eo->blo', emb[:, k:k + Lc, :], p['wconv'][k])
    conv = conv + p['bconv'][None]
    hid = conv.max(axis=1)
    enc = hid @ p['wlin'] + p['blin']

    d = enc @ p['wd'] + p['bd']
    tempo = d[:, 0]
    x = d[:, 1:]
    Lk = p['wup'].shape[0]
    Kd, Cod, Emb = p['wc'].shape
    hid2 = x.reshape(-1, 1) * p['wup'][:, 0][None, :] + p['bup'][:, 0][None, :]
    hid2 = jnp.maximum(hid2.reshape(Bn, Cod, Lk), 0.0)
    Lm = Lk - Kd + 1
    note = jnp.zeros((Bn, Lm, Emb), jnp.float32)
    for k in range(Kd):
        note = note + jnp.einsum('bcl,ce->ble', hid2[:, :, k:k + Lm], p['wc'][k])
    note = note + p['bc'][None]
    note = note.reshape(Bn * Lm, Emb) @ p['wemb'] + p['bemb']
    return note, tempo


# ------------------------------ params ---------------------------------------
def init_params(key):
    ks = jax.random.split(key, 13)
    s = 0.1
    n = lambda k, shape: (jax.random.normal(k, shape, jnp.float32) * s)
    Lk = MUS_L + MUS_K - 1
    return dict(
        embed=n(ks[0], (VS, LYR_E)),                     # nn.Embedding(vs, E)
        wconv=n(ks[1], (LYR_K, LYR_E, LYR_Co)),          # nn.Conv2d(1, Co, (K, E))
        bconv=n(ks[2], (1, LYR_Co)),
        wlin=n(ks[3], (LYR_Co, M)),                      # nn.Linear(Co, M)
        blin=n(ks[4], (1, M)),
        wd=n(ks[5], (M, 1 + MUS_Co)),                    # nn.Linear(M, 1+Co)
        bd=n(ks[6], (1, 1 + MUS_Co)),
        wup=n(ks[7], (Lk, 1)),                           # nn.Linear(1, L+K-1)
        bup=n(ks[8], (Lk, 1)),
        wc=n(ks[9], (MUS_K, MUS_Co, NOTE_EMB)),          # nn.Conv1d(Co, Emb, K)
        bc=n(ks[10], (1, NOTE_EMB)),
        wemb=n(ks[11], (NOTE_EMB, NOTE_SIZ)),            # nn.Linear(Emb, Siz)
        bemb=n(ks[12], (1, NOTE_SIZ)),
    )


if __name__ == "__main__":
    key = jax.random.PRNGKey(0)
    pkey, tkey = jax.random.split(key)
    params = init_params(pkey)
    tokens = jax.random.randint(tkey, (B, LYR_L), 0, VS, dtype=jnp.int32)

    note, tempo = jax.jit(translator_forward)(tokens, params)
    jax.block_until_ready((note, tempo))

    note_ref, tempo_ref = reference_forward(tokens, params)
    np.testing.assert_allclose(np.asarray(note), np.asarray(note_ref),
                               rtol=1e-4, atol=1e-4)
    np.testing.assert_allclose(np.asarray(tempo), np.asarray(tempo_ref),
                               rtol=1e-4, atol=1e-4)

    assert note.shape == (B * MUS_L, NOTE_SIZ)
    assert tempo.shape == (B,)
    print("KERNEL_OK")
</pallas_src>

<mosaic_0001>
module attributes {stable_mosaic.version = 11 : i64} {
  func.func @translator_kernel(%arg0: memref<32x1xi32, #tpu.memory_space<vmem>>, %arg1: memref<50x8xf32, #tpu.memory_space<vmem>>, %arg2: memref<24x8xf32, #tpu.memory_space<vmem>>, %arg3: memref<1x8xf32, #tpu.memory_space<vmem>>, %arg4: memref<8x16xf32, #tpu.memory_space<vmem>>, %arg5: memref<1x16xf32, #tpu.memory_space<vmem>>, %arg6: memref<16x9xf32, #tpu.memory_space<vmem>>, %arg7: memref<1x9xf32, #tpu.memory_space<vmem>>, %arg8: memref<10x1xf32, #tpu.memory_space<vmem>>, %arg9: memref<10x1xf32, #tpu.memory_space<vmem>>, %arg10: memref<24x8xf32, #tpu.memory_space<vmem>>, %arg11: memref<1x8xf32, #tpu.memory_space<vmem>>, %arg12: memref<8x16xf32, #tpu.memory_space<vmem>>, %arg13: memref<1x16xf32, #tpu.memory_space<vmem>>, %arg14: memref<2x256xf32, #tpu.memory_space<vmem>>) attributes {dimension_semantics = [], scalar_prefetch = 0 : i64, scratch_operands = 0 : i64, tpu.core_type = #tpu.core_type<tc>} {
    %c0 = arith.constant 0 : index
    %c0_0 = arith.constant 0 : index
    %0 = vector.load %arg0[%c0, %c0_0] : memref<32x1xi32, #tpu.memory_space<vmem>>, vector<32x1xi32>
    %1 = tpu.iota {dimensions = array<i32: 1>} : vector<32x50xi32>
    %2 = vector.broadcast %0 : vector<32x1xi32> to vector<32x50xi32>
    %3 = arith.cmpi eq, %2, %1 : vector<32x50xi32>
    %4 = arith.extui %3 : vector<32x50xi1> to vector<32x50xi32>
    %5 = arith.sitofp %4 : vector<32x50xi32> to vector<32x50xf32>
    %c0_1 = arith.constant 0 : index
    %c0_2 = arith.constant 0 : index
    %6 = vector.load %arg1[%c0_1, %c0_2] : memref<50x8xf32, #tpu.memory_space<vmem>>, vector<50x8xf32>
    %cst = arith.constant dense<0.000000e+00> : vector<32x8xf32>
    %7 = tpu.matmul %5, %6, %cst {dimension_numbers = #tpu.dot_dimension_numbers<[1], [0], [0], [1], [0, 0, 1, 1], [], []>} : vector<32x50xf32>, vector<50x8xf32>, vector<32x8xf32> -> vector<32x8xf32>
    %8 = vector.extract_strided_slice %7 {offsets = [0, 0], sizes = [16, 8], strides = [1, 1]} : vector<32x8xf32> to vector<16x8xf32>
    %9 = vector.extract_strided_slice %8 {offsets = [0, 0], sizes = [14, 8], strides = [1, 1]} : vector<16x8xf32> to vector<14x8xf32>
    %10 = vector.extract_strided_slice %8 {offsets = [1, 0], sizes = [14, 8], strides = [1, 1]} : vector<16x8xf32> to vector<14x8xf32>
    %11 = vector.extract_strided_slice %8 {offsets = [2, 0], sizes = [14, 8], strides = [1, 1]} : vector<16x8xf32> to vector<14x8xf32>
    %12 = tpu.concatenate %9, %10, %11 in 1 : vector<14x8xf32>, vector<14x8xf32>, vector<14x8xf32> -> vector<14x24xf32>
    %13 = vector.extract_strided_slice %7 {offsets = [16, 0], sizes = [16, 8], strides = [1, 1]} : vector<32x8xf32> to vector<16x8xf32>
    %14 = vector.extract_strided_slice %13 {offsets = [0, 0], sizes = [14, 8], strides = [1, 1]} : vector<16x8xf32> to vector<14x8xf32>
    %15 = vector.extract_strided_slice %13 {offsets = [1, 0], sizes = [14, 8], strides = [1, 1]} : vector<16x8xf32> to vector<14x8xf32>
    %16 = vector.extract_strided_slice %13 {offsets = [2, 0], sizes = [14, 8], strides = [1, 1]} : vector<16x8xf32> to vector<14x8xf32>
    %17 = tpu.concatenate %14, %15, %16 in 1 : vector<14x8xf32>, vector<14x8xf32>, vector<14x8xf32> -> vector<14x24xf32>
    %18 = tpu.concatenate %12, %17 in 0 : vector<14x24xf32>, vector<14x24xf32> -> vector<28x24xf32>
    %c0_3 = arith.constant 0 : index
    %c0_4 = arith.constant 0 : index
    %19 = vector.load %arg2[%c0_3, %c0_4] : memref<24x8xf32, #tpu.memory_space<vmem>>, vector<24x8xf32>
    %cst_5 = arith.constant dense<0.000000e+00> : vector<28x8xf32>
    %20 = tpu.matmul %18, %19, %cst_5 {dimension_numbers = #tpu.dot_dimension_numbers<[1], [0], [0], [1], [0, 0, 1, 1], [], []>} : vector<28x24xf32>, vector<24x8xf32>, vector<28x8xf32> -> vector<28x8xf32>
    %c0_6 = arith.constant 0 : index
    %c0_7 = arith.constant 0 : index
    %21 = vector.load %arg3[%c0_6, %c0_7] : memref<1x8xf32, #tpu.memory_space<vmem>>, vector<1x8xf32>
    %22 = vector.broadcast %21 : vector<1x8xf32> to vector<28x8xf32>
    %23 = arith.addf %20, %22 : vector<28x8xf32>
    %24 = vector.extract_strided_slice %23 {offsets = [0, 0], sizes = [14, 8], strides = [1, 1]} : vector<28x8xf32> to vector<14x8xf32>
    %cst_8 = arith.constant dense<0xFF800000> : vector<8xf32>
    %25 = vector.multi_reduction <maximumf>, %24, %cst_8 [0] : vector<14x8xf32> to vector<8xf32>
    %26 = vector.shape_cast %25 : vector<8xf32> to vector<1x8xf32>
    %27 = vector.extract_strided_slice %23 {offsets = [14, 0], sizes = [14, 8], strides = [1, 1]} : vector<28x8xf32> to vector<14x8xf32>
    %cst_9 = arith.constant dense<0xFF800000> : vector<8xf32>
    %28 = vector.multi_reduction <maximumf>, %27, %cst_9 [0] : vector<14x8xf32> to vector<8xf32>
    %29 = vector.shape_cast %28 : vector<8xf32> to vector<1x8xf32>
    %30 = tpu.concatenate %26, %29 in 0 : vector<1x8xf32>, vector<1x8xf32> -> vector<2x8xf32>
    %c0_10 = arith.constant 0 : index
    %c0_11 = arith.constant 0 : index
    %31 = vector.load %arg4[%c0_10, %c0_11] : memref<8x16xf32, #tpu.memory_space<vmem>>, vector<8x16xf32>
    %cst_12 = arith.constant dense<0.000000e+00> : vector<2x16xf32>
    %32 = tpu.matmul %30, %31, %cst_12 {dimension_numbers = #tpu.dot_dimension_numbers<[1], [0], [0], [1], [0, 0, 1, 1], [], []>} : vector<2x8xf32>, vector<8x16xf32>, vector<2x16xf32> -> vector<2x16xf32>
    %c0_13 = arith.constant 0 : index
    %c0_14 = arith.constant 0 : index
    %33 = vector.load %arg5[%c0_13, %c0_14] : memref<1x16xf32, #tpu.memory_space<vmem>>, vector<1x16xf32>
    %34 = vector.broadcast %33 : vector<1x16xf32> to vector<2x16xf32>
    %35 = arith.addf %32, %34 : vector<2x16xf32>
    %c0_15 = arith.constant 0 : index
    %c0_16 = arith.constant 0 : index
    %36 = vector.load %arg6[%c0_15, %c0_16] : memref<16x9xf32, #tpu.memory_space<vmem>>, vector<16x9xf32>
    %cst_17 = arith.constant dense<0.000000e+00> : vector<2x9xf32>
    %37 = tpu.matmul %35, %36, %cst_17 {dimension_numbers = #tpu.dot_dimension_numbers<[1], [0], [0], [1], [0, 0, 1, 1], [], []>} : vector<2x16xf32>, vector<16x9xf32>, vector<2x9xf32> -> vector<2x9xf32>
    %c0_18 = arith.constant 0 : index
    %c0_19 = arith.constant 0 : index
    %38 = vector.load %arg7[%c0_18, %c0_19] : memref<1x9xf32, #tpu.memory_space<vmem>>, vector<1x9xf32>
    %39 = vector.broadcast %38 : vector<1x9xf32> to vector<2x9xf32>
    %40 = arith.addf %37, %39 : vector<2x9xf32>
    %41 = vector.extract_strided_slice %40 {offsets = [0, 0], sizes = [2, 1], strides = [1, 1]} : vector<2x9xf32> to vector<2x1xf32>
    %42 = vector.extract_strided_slice %40 {offsets = [0, 1], sizes = [2, 8], strides = [1, 1]} : vector<2x9xf32> to vector<2x8xf32>
    %43 = vector.extract_strided_slice %42 {offsets = [0, 0], sizes = [1, 8], strides = [1, 1]} : vector<2x8xf32> to vector<1x8xf32>
    %44 = vector.extract_strided_slice %42 {offsets = [1, 0], sizes = [1, 8], strides = [1, 1]} : vector<2x8xf32> to vector<1x8xf32>
    %45 = tpu.concatenate %43, %44 in 1 : vector<1x8xf32>, vector<1x8xf32> -> vector<1x16xf32>
    %c0_20 = arith.constant 0 : index
    %c0_21 = arith.constant 0 : index
    %46 = vector.load %arg8[%c0_20, %c0_21] : memref<10x1xf32, #tpu.memory_space<vmem>>, vector<10x1xf32>
    %cst_22 = arith.constant dense<0.000000e+00> : vector<10x16xf32>
    %47 = tpu.matmul %46, %45, %cst_22 {dimension_numbers = #tpu.dot_dimension_numbers<[1], [0], [0], [1], [0, 0, 1, 1], [], []>} : vector<10x1xf32>, vector<1x16xf32>, vector<10x16xf32> -> vector<10x16xf32>
    %c0_23 = arith.constant 0 : index
    %c0_24 = arith.constant 0 : index
    %48 = vector.load %arg9[%c0_23, %c0_24] : memref<10x1xf32, #tpu.memory_space<vmem>>, vector<10x1xf32>
    %49 = vector.broadcast %48 : vector<10x1xf32> to vector<10x16xf32>
    %50 = arith.addf %47, %49 : vector<10x16xf32>
    %cst_25 = arith.constant 0.000000e+00 : f32
    %51 = vector.broadcast %cst_25 : f32 to vector<10x16xf32>
    %52 = arith.maximumf %50, %51 : vector<10x16xf32>
    %53 = vector.extract_strided_slice %52 {offsets = [0, 0], sizes = [10, 8], strides = [1, 1]} : vector<10x16xf32> to vector<10x8xf32>
    %54 = vector.extract_strided_slice %53 {offsets = [0, 0], sizes = [8, 8], strides = [1, 1]} : vector<10x8xf32> to vector<8x8xf32>
    %55 = vector.extract_strided_slice %53 {offsets = [1, 0], sizes = [8, 8], strides = [1, 1]} : vector<10x8xf32> to vector<8x8xf32>
    %56 = vector.extract_strided_slice %53 {offsets = [2, 0], sizes = [8, 8], strides = [1, 1]} : vector<10x8xf32> to vector<8x8xf32>
    %57 = tpu.concatenate %54, %55, %56 in 1 : vector<8x8xf32>, vector<8x8xf32>, vector<8x8xf32> -> vector<8x24xf32>
    %58 = vector.extract_strided_slice %52 {offsets = [0, 8], sizes = [10, 8], strides = [1, 1]} : vector<10x16xf32> to vector<10x8xf32>
    %59 = vector.extract_strided_slice %58 {offsets = [0, 0], sizes = [8, 8], strides = [1, 1]} : vector<10x8xf32> to vector<8x8xf32>
    %60 = vector.extract_strided_slice %58 {offsets = [1, 0], sizes = [8, 8], strides = [1, 1]} : vector<10x8xf32> to vector<8x8xf32>
    %61 = vector.extract_strided_slice %58 {offsets = [2, 0], sizes = [8, 8], strides = [1, 1]} : vector<10x8xf32> to vector<8x8xf32>
    %62 = tpu.concatenate %59, %60, %61 in 1 : vector<8x8xf32>, vector<8x8xf32>, vector<8x8xf32> -> vector<8x24xf32>
    %63 = tpu.concatenate %57, %62 in 0 : vector<8x24xf32>, vector<8x24xf32> -> vector<16x24xf32>
    %c0_26 = arith.constant 0 : index
    %c0_27 = arith.constant 0 : index
    %64 = vector.load %arg10[%c0_26, %c0_27] : memref<24x8xf32, #tpu.memory_space<vmem>>, vector<24x8xf32>
    %cst_28 = arith.constant dense<0.000000e+00> : vector<16x8xf32>
    %65 = tpu.matmul %63, %64, %cst_28 {dimension_numbers = #tpu.dot_dimension_numbers<[1], [0], [0], [1], [0, 0, 1, 1], [], []>} : vector<16x24xf32>, vector<24x8xf32>, vector<16x8xf32> -> vector<16x8xf32>
    %c0_29 = arith.constant 0 : index
    %c0_30 = arith.constant 0 : index
    %66 = vector.load %arg11[%c0_29, %c0_30] : memref<1x8xf32, #tpu.memory_space<vmem>>, vector<1x8xf32>
    %67 = vector.broadcast %66 : vector<1x8xf32> to vector<16x8xf32>
    %68 = arith.addf %65, %67 : vector<16x8xf32>
    %c0_31 = arith.constant 0 : index
    %c0_32 = arith.constant 0 : index
    %69 = vector.load %arg12[%c0_31, %c0_32] : memref<8x16xf32, #tpu.memory_space<vmem>>, vector<8x16xf32>
    %cst_33 = arith.constant dense<0.000000e+00> : vector<16x16xf32>
    %70 = tpu.matmul %68, %69, %cst_33 {dimension_numbers = #tpu.dot_dimension_numbers<[1], [0], [0], [1], [0, 0, 1, 1], [], []>} : vector<16x8xf32>, vector<8x16xf32>, vector<16x16xf32> -> vector<16x16xf32>
    %c0_34 = arith.constant 0 : index
    %c0_35 = arith.constant 0 : index
    %71 = vector.load %arg13[%c0_34, %c0_35] : memref<1x16xf32, #tpu.memory_space<vmem>>, vector<1x16xf32>
    %72 = vector.broadcast %71 : vector<1x16xf32> to vector<16x16xf32>
    %73 = arith.addf %70, %72 : vector<16x16xf32>
    %74 = vector.extract_strided_slice %73 {offsets = [0, 0], sizes = [1, 16], strides = [1, 1]} : vector<16x16xf32> to vector<1x16xf32>
    %75 = vector.extract_strided_slice %73 {offsets = [1, 0], sizes = [1, 16], strides = [1, 1]} : vector<16x16xf32> to vector<1x16xf32>
    %76 = vector.extract_strided_slice %73 {offsets = [2, 0], sizes = [1, 16], strides = [1, 1]} : vector<16x16xf32> to vector<1x16xf32>
    %77 = vector.extract_strided_slice %73 {offsets = [3, 0], sizes = [1, 16], strides = [1, 1]} : vector<16x16xf32> to vector<1x16xf32>
    %78 = vector.extract_strided_slice %73 {offsets = [4, 0], sizes = [1, 16], strides = [1, 1]} : vector<16x16xf32> to vector<1x16xf32>
    %79 = vector.extract_strided_slice %73 {offsets = [5, 0], sizes = [1, 16], strides = [1, 1]} : vector<16x16xf32> to vector<1x16xf32>
    %80 = vector.extract_strided_slice %73 {offsets = [6, 0], sizes = [1, 16], strides = [1, 1]} : vector<16x16xf32> to vector<1x16xf32>
    %81 = vector.extract_strided_slice %73 {offsets = [7, 0], sizes = [1, 16], strides = [1, 1]} : vector<16x16xf32> to vector<1x16xf32>
    %82 = tpu.concatenate %74, %75, %76, %77, %78, %79, %80, %81 in 1 : vector<1x16xf32>, vector<1x16xf32>, vector<1x16xf32>, vector<1x16xf32>, vector<1x16xf32>, vector<1x16xf32>, vector<1x16xf32>, vector<1x16xf32> -> vector<1x128xf32>
    %83 = vector.extract_strided_slice %41 {offsets = [0, 0], sizes = [1, 1], strides = [1, 1]} : vector<2x1xf32> to vector<1x1xf32>
    %cst_36 = arith.constant 0.000000e+00 : f32
    %84 = vector.broadcast %cst_36 : f32 to vector<1x127xf32>
    %85 = tpu.concatenate %83, %84 in 1 : vector<1x1xf32>, vector<1x127xf32> -> vector<1x128xf32>
    %86 = tpu.concatenate %82, %85 in 1 : vector<1x128xf32>, vector<1x128xf32> -> vector<1x256xf32>
    %87 = vector.extract_strided_slice %73 {offsets = [8, 0], sizes = [1, 16], strides = [1, 1]} : vector<16x16xf32> to vector<1x16xf32>
    %88 = vector.extract_strided_slice %73 {offsets = [9, 0], sizes = [1, 16], strides = [1, 1]} : vector<16x16xf32> to vector<1x16xf32>
    %89 = vector.extract_strided_slice %73 {offsets = [10, 0], sizes = [1, 16], strides = [1, 1]} : vector<16x16xf32> to vector<1x16xf32>
    %90 = vector.extract_strided_slice %73 {offsets = [11, 0], sizes = [1, 16], strides = [1, 1]} : vector<16x16xf32> to vector<1x16xf32>
    %91 = vector.extract_strided_slice %73 {offsets = [12, 0], sizes = [1, 16], strides = [1, 1]} : vector<16x16xf32> to vector<1x16xf32>
    %92 = vector.extract_strided_slice %73 {offsets = [13, 0], sizes = [1, 16], strides = [1, 1]} : vector<16x16xf32> to vector<1x16xf32>
    %93 = vector.extract_strided_slice %73 {offsets = [14, 0], sizes = [1, 16], strides = [1, 1]} : vector<16x16xf32> to vector<1x16xf32>
    %94 = vector.extract_strided_slice %73 {offsets = [15, 0], sizes = [1, 16], strides = [1, 1]} : vector<16x16xf32> to vector<1x16xf32>
    %95 = tpu.concatenate %87, %88, %89, %90, %91, %92, %93, %94 in 1 : vector<1x16xf32>, vector<1x16xf32>, vector<1x16xf32>, vector<1x16xf32>, vector<1x16xf32>, vector<1x16xf32>, vector<1x16xf32>, vector<1x16xf32> -> vector<1x128xf32>
    %96 = vector.extract_strided_slice %41 {offsets = [1, 0], sizes = [1, 1], strides = [1, 1]} : vector<2x1xf32> to vector<1x1xf32>
    %cst_37 = arith.constant 0.000000e+00 : f32
    %97 = vector.broadcast %cst_37 : f32 to vector<1x127xf32>
    %98 = tpu.concatenate %96, %97 in 1 : vector<1x1xf32>, vector<1x127xf32> -> vector<1x128xf32>
    %99 = tpu.concatenate %95, %98 in 1 : vector<1x128xf32>, vector<1x128xf32> -> vector<1x256xf32>
    %100 = tpu.concatenate %86, %99 in 0 : vector<1x256xf32>, vector<1x256xf32> -> vector<2x256xf32>
    %c0_38 = arith.constant 0 : index
    %c0_39 = arith.constant 0 : index
    %101 = vector.load %arg14[%c0_38, %c0_39] : memref<2x256xf32, #tpu.memory_space<vmem>>, vector<2x256xf32>
    tpu.vector_store %arg14[%c0_38, %c0_39], %100 {strides = array<i32>} : memref<2x256xf32, #tpu.memory_space<vmem>>, vector<2x256xf32>,
    return
  }
}

</mosaic_0001>

<llo_original>
// kernel: translator_forward.1
$region0: #{translator_forward.1}
  #allocation0 [shape = 'u32[]', space=smem, size = 0x4, offset = 0x4, fixed_abs, tag = 'smem constant byte address 0x4 - core index']
  #allocation1 [shape = 'u32[144,128]{1,0:T(1,128)}', space=vmem, size = 0x12000, scoped, tag = 'internal scratch']
  %s0 = inlined_call_operand.vmem [shape: s32[32,1], index: 0, kind: input, shape index: {}]
  %s1 = inlined_call_operand.vmem [shape: f32[50,8], index: 1, kind: input, shape index: {}]
  %s2 = inlined_call_operand.vmem [shape: f32[24,8], index: 2, kind: input, shape index: {}]
  %s3 = inlined_call_operand.vmem [shape: f32[1,8], index: 3, kind: input, shape index: {}]
  %s4 = inlined_call_operand.vmem [shape: f32[8,16], index: 4, kind: input, shape index: {}]
  %s5 = inlined_call_operand.vmem [shape: f32[1,16], index: 5, kind: input, shape index: {}]
  %s6 = inlined_call_operand.vmem [shape: f32[16,9], index: 6, kind: input, shape index: {}]
  %s7 = inlined_call_operand.vmem [shape: f32[1,9], index: 7, kind: input, shape index: {}]
  %s8 = inlined_call_operand.vmem [shape: f32[10,1], index: 8, kind: input, shape index: {}]
  %s9 = inlined_call_operand.vmem [shape: f32[10,1], index: 9, kind: input, shape index: {}]
  %s10 = inlined_call_operand.vmem [shape: f32[24,8], index: 10, kind: input, shape index: {}]
  %s11 = inlined_call_operand.vmem [shape: f32[1,8], index: 11, kind: input, shape index: {}]
  %s12 = inlined_call_operand.vmem [shape: f32[8,16], index: 12, kind: input, shape index: {}]
  %s13 = inlined_call_operand.vmem [shape: f32[1,16], index: 13, kind: input, shape index: {}]
  %s14 = inlined_call_operand.vmem [shape: f32[2,256], index: 14, kind: output, shape index: {}]
  %s15 = sld [smem:[#allocation0]]
  $region66: #{translator_forward.1} parent=0
    _
  %s17 = ssub.s32 1, %s15
  %s18 = scalar_select 0, %s17, %s15
  // Predicated region
  $region2: #{translator_forward.1} parent=0 // pred_check
    _
  $region3: #{translator_forward.1} parent=0 // pred_check_branch
    %20 = sbr.rel (0) target = $region5
  $region4: #{translator_forward.1} parent=0 // pred_region
    _
  $region5: #{translator_forward.1} parent=0 // pred_fallthru
    _
  // Predicated region
  $region6: #{translator_forward.1} parent=0 // pred_check
    _
  $region7: #{translator_forward.1} parent=0 // pred_check_branch
    %22 = sbr.rel (0) target = $region9
  $region8: #{translator_forward.1} parent=0 // pred_region
    _
  $region9: #{translator_forward.1} parent=0 // pred_fallthru
    _
  // Predicated region
  $region10: #{translator_forward.1} parent=0 // pred_check
    _
  $region11: #{translator_forward.1} parent=0 // pred_check_branch
    %24 = sbr.rel (0) target = $region13
  $region12: #{translator_forward.1} parent=0 // pred_region
    _
  $region13: #{translator_forward.1} parent=0 // pred_fallthru
    _
  // Predicated region
  $region14: #{translator_forward.1} parent=0 // pred_check
    _
  $region15: #{translator_forward.1} parent=0 // pred_check_branch
    %26 = sbr.rel (0) target = $region17
  $region16: #{translator_forward.1} parent=0 // pred_region
    _
  $region17: #{translator_forward.1} parent=0 // pred_fallthru
    _
  // Predicated region
  $region18: #{translator_forward.1} parent=0 // pred_check
    _
  $region19: #{translator_forward.1} parent=0 // pred_check_branch
    %28 = sbr.rel (0) target = $region21
  $region20: #{translator_forward.1} parent=0 // pred_region
    _
  $region21: #{translator_forward.1} parent=0 // pred_fallthru
    _
  // Predicated region
  $region22: #{translator_forward.1} parent=0 // pred_check
    _
  $region23: #{translator_forward.1} parent=0 // pred_check_branch
    %30 = sbr.rel (0) target = $region25
  $region24: #{translator_forward.1} parent=0 // pred_region
    _
  $region25: #{translator_forward.1} parent=0 // pred_fallthru
    _
  // Predicated region
  $region26: #{translator_forward.1} parent=0 // pred_check
    _
  $region27: #{translator_forward.1} parent=0 // pred_check_branch
    %32 = sbr.rel (0) target = $region29
  $region28: #{translator_forward.1} parent=0 // pred_region
    _
  $region29: #{translator_forward.1} parent=0 // pred_fallthru
    _
  // Predicated region
  $region30: #{translator_forward.1} parent=0 // pred_check
    _
  $region31: #{translator_forward.1} parent=0 // pred_check_branch
    %34 = sbr.rel (0) target = $region33
  $region32: #{translator_forward.1} parent=0 // pred_region
    _
  $region33: #{translator_forward.1} parent=0 // pred_fallthru
    _
  // Predicated region
  $region34: #{translator_forward.1} parent=0 // pred_check
    _
  $region35: #{translator_forward.1} parent=0 // pred_check_branch
    %36 = sbr.rel (0) target = $region37
  $region36: #{translator_forward.1} parent=0 // pred_region
    _
  $region37: #{translator_forward.1} parent=0 // pred_fallthru
    _
  // Predicated region
  $region38: #{translator_forward.1} parent=0 // pred_check
    _
  $region39: #{translator_forward.1} parent=0 // pred_check_branch
    %38 = sbr.rel (0) target = $region41
  $region40: #{translator_forward.1} parent=0 // pred_region
    _
  $region41: #{translator_forward.1} parent=0 // pred_fallthru
    _
  // Predicated region
  $region42: #{translator_forward.1} parent=0 // pred_check
    _
  $region43: #{translator_forward.1} parent=0 // pred_check_branch
    %40 = sbr.rel (0) target = $region45
  $region44: #{translator_forward.1} parent=0 // pred_region
    _
  $region45: #{translator_forward.1} parent=0 // pred_fallthru
    _
  // Predicated region
  $region46: #{translator_forward.1} parent=0 // pred_check
    _
  $region47: #{translator_forward.1} parent=0 // pred_check_branch
    %42 = sbr.rel (0) target = $region49
  $region48: #{translator_forward.1} parent=0 // pred_region
    _
  $region49: #{translator_forward.1} parent=0 // pred_fallthru
    _
  // Predicated region
  $region50: #{translator_forward.1} parent=0 // pred_check
    _
  $region51: #{translator_forward.1} parent=0 // pred_check_branch
    %44 = sbr.rel (0) target = $region53
  $region52: #{translator_forward.1} parent=0 // pred_region
    _
  $region53: #{translator_forward.1} parent=0 // pred_fallthru
    _
  // Predicated region
  $region54: #{translator_forward.1} parent=0 // pred_check
    _
  $region55: #{translator_forward.1} parent=0 // pred_check_branch
    %46 = sbr.rel (0) target = $region57
  $region56: #{translator_forward.1} parent=0 // pred_region
    _
  $region57: #{translator_forward.1} parent=0 // pred_fallthru
    _
  %v47 = vld [vmem:[%s0] sm:$0xff]
  %v48 = vld [vmem:[%s0 + $0x8] sm:$0xff]
  %v49 = vld [vmem:[%s0 + $0x10] sm:$0xff]
  %v50 = vld [vmem:[%s0 + $0x18] sm:$0xff]
  %v51 = vlaneseq
  %v52 = vand.u32 %v51, 127
  %53 = vset.pattern.permute.xlu0 0
  %54 = vperm.xlu0 %53, %v47
  %v55 = vpop.permute.xlu0 %54
  %56 = vset.pattern.permute.xlu0 0
  %57 = vperm.xlu0 %56, %v48
  %v58 = vpop.permute.xlu0 %57
  %59 = vset.pattern.permute.xlu0 0
  %60 = vperm.xlu0 %59, %v49
  %v61 = vpop.permute.xlu0 %60
  %62 = vset.pattern.permute.xlu0 0
  %63 = vperm.xlu0 %62, %v50
  %v64 = vpop.permute.xlu0 %63
  %vm65 = vcmp.eq.s32.totalorder %v55, %v52
  %vm66 = vcmp.eq.s32.totalorder %v58, %v52
  %vm67 = vcmp.eq.s32.totalorder %v61, %v52
  %vm68 = vcmp.eq.s32.totalorder %v64, %v52
  %v69 = vsel %vm65, 1, 0
  %v70 = vsel %vm66, 1, 0
  %v71 = vsel %vm67, 1, 0
  %v72 = vsel %vm68, 1, 0
  %v73 = vcvt.s32.f32 %v69
  %v74 = vcvt.s32.f32 %v70
  %v75 = vcvt.s32.f32 %v71
  %v76 = vcvt.s32.f32 %v72
  %v77 = vld [vmem:[%s1] sm:$0xff]
  %v78 = vld [vmem:[%s1 + $0x8] sm:$0xff]
  %v79 = vld [vmem:[%s1 + $0x10] sm:$0xff]
  %v80 = vld [vmem:[%s1 + $0x18] sm:$0xff]
  %v81 = vld [vmem:[%s1 + $0x20] sm:$0xff]
  %v82 = vld [vmem:[%s1 + $0x28] sm:$0xff]
  %v83 = vld [vmem:[%s1 + $0x30] sm:$0x3]
  %vm84 = vcmask 408576
  %v86 = vsel %vm84, %v73, 0
  %v89 = vsel %vm84, %v74, 0
  %v92 = vsel %vm84, %v75, 0
  %v95 = vsel %vm84, %v76, 0
  %vm97 = vcmask 1041408
  %v99 = vsel %vm97, %v83, 0
  %101 = vmatprep.subr.mxu0 0.0
  %102 = vmatpush1.msra.mxu0 %v77
  %103 = vmatprep.subr.mxu0 0.0
  %104 = vmatpush1.msra.mxu0 %v78
  %105 = vmatprep.subr.mxu0 0.0
  %106 = vmatpush1.msra.mxu0 %v79
  %107 = vmatprep.subr.mxu0 0.0
  %108 = vmatpush1.msra.mxu0 %v80
  %109 = vmatprep.subr.mxu0 0.0
  %110 = vmatpush1.msra.mxu0 %v81
  %111 = vmatprep.subr.mxu0 0.0
  %112 = vmatpush1.msra.mxu0 %v82
  %113 = vmatprep.subr.mxu0 0.0
  %114 = vmatpush1.msra.mxu0 %v99
  %115 = vmatprep.subr.mxu0 0.0
  %116 = vmatpush1.msra.mxu0 0.0
  %117 = vmatprep.subr.mxu0 0.0
  %118 = vmatpush1.msra.mxu0 0.0
  %119 = vmatprep.subr.mxu0 0.0
  %120 = vmatpush1.msra.mxu0 0.0
  %121 = vmatprep.subr.mxu0 0.0
  %122 = vmatpush1.msra.mxu0 0.0
  %123 = vmatprep.subr.mxu0 0.0
  %124 = vmatpush1.msra.mxu0 0.0
  %125 = vmatprep.subr.mxu0 0.0
  %126 = vmatpush1.msra.mxu0 0.0
  %127 = vmatprep.subr.mxu0 0.0
  %128 = vmatpush1.msra.mxu0 0.0
  %129 = vmatprep.subr.mxu0 0.0
  %130 = vmatpush1.msra.mxu0 0.0
  %131 = vmatprep.subr.mxu0 0.0
  %132 = vmatpush1.msra.mxu0 0.0
  %133 = vmatprep.subr.mxu0 0.0
  %134 = vmatpush1.msra.mxu0 0.0
  %135 = vmatprep.subr.mxu0 0.0
  %136 = vmatpush1.msra.mxu0 0.0
  %137 = vmatprep.subr.mxu0 0.0
  %138 = vmatpush1.msra.mxu0 0.0
  %139 = vmatprep.subr.mxu0 0.0
  %140 = vmatpush1.msra.mxu0 0.0
  %141 = vmatprep.subr.mxu0 0.0
  %142 = vmatpush1.msra.mxu0 0.0
  %143 = vmatprep.subr.mxu0 0.0
  %144 = vmatpush1.msra.mxu0 0.0
  %145 = vmatprep.subr.mxu0 0.0
  %146 = vmatpush1.msra.mxu0 0.0
  %147 = vmatprep.subr.mxu0 0.0
  %148 = vmatpush1.msra.mxu0 0.0
  %149 = vmatprep.subr.mxu0 0.0
  %150 = vmatpush1.msra.mxu0 0.0
  %151 = vmatprep.subr.mxu0 0.0
  %152 = vmatpush1.msra.mxu0 0.0
  %153 = vmatprep.subr.mxu0 0.0
  %154 = vmatpush1.msra.mxu0 0.0
  %155 = vmatprep.subr.mxu0 0.0
  %156 = vmatpush1.msra.mxu0 0.0
  %157 = vmatprep.subr.mxu0 0.0
  %158 = vmatpush1.msra.mxu0 0.0
  %159 = vmatprep.subr.mxu0 0.0
  %160 = vmatpush1.msra.mxu0 0.0
  %161 = vmatprep.subr.mxu0 0.0
  %162 = vmatpush1.msra.mxu0 0.0
  %163 = vmatprep.subr.mxu0 0.0
  %164 = vmatpush1.msra.mxu0 0.0
  %165 = vmatprep.mubr.f32.mxu0 0.0
  %166 = vmatmul.mubr.f32.gmra.mrb[0].mxu0 %v86
  %v167 = vpop.f32.mrb[0].mxu0
  %v168 = vadd.f32 0.0, %v167
  %v169 = vpop.f32.mrb[0].mxu0
  %170 = vmatprep.mubr.f32.mxu0 0.0
  %171 = vmatmul.mubr.f32.gmra.mrb[0].mxu0 %v89
  %v172 = vpop.f32.mrb[0].mxu0
  %v173 = vadd.f32 0.0, %v172
  %v174 = vpop.f32.mrb[0].mxu0
  %175 = vmatprep.mubr.f32.mxu0 0.0
  %176 = vmatmul.mubr.f32.gmra.mrb[0].mxu0 %v92
  %v177 = vpop.f32.mrb[0].mxu0
  %v178 = vadd.f32 0.0, %v177
  %v179 = vpop.f32.mrb[0].mxu0
  %180 = vmatprep.mubr.f32.mxu0 0.0
  %181 = vmatmul.mubr.f32.gmra.mrb[0].mxu0 %v95
  %v182 = vpop.f32.mrb[0].mxu0
  %v183 = vadd.f32 0.0, %v182
  %v184 = vpop.f32.mrb[0].mxu0
  %185 = vdwg.mxu0
  %vm188 = vcmask 1046528
  %v189 = vrot.slane %v168, 1
  %v190 = vrot.slane %v173, 1
  %v191 = vsel %vm188, %v189, %v190
  %192 = vrot.lane.b32.xlu0 %v191, 8
  %v193 = vpop.permute.xlu0 %192
  %194 = vrot.lane.b32.xlu0 %v190, 8
  %v195 = vpop.permute.xlu0 %194
  %vm198 = vcmask 1045504
  %v199 = vrot.slane %v168, 2
  %v200 = vrot.slane %v173, 2
  %v201 = vsel %vm198, %v199, %v200
  %202 = vrot.lane.b32.xlu0 %v201, 16
  %v203 = vpop.permute.xlu0 %202
  %204 = vrot.lane.b32.xlu0 %v200, 16
  %v205 = vpop.permute.xlu0 %204
  %vm208 = vcmask 64512
  %v209 = vsel %vm208, %v168, %v193
  %v210 = vsel %vm208, %v173, %v195
  %vm211 = vcmask 130048
  %v212 = vsel %vm211, %v209, %v203
  %v213 = vsel %vm211, %v210, %v205
  %v216 = vrot.slane %v178, 1
  %v217 = vrot.slane %v183, 1
  %v218 = vsel %vm188, %v216, %v217
  %219 = vrot.lane.b32.xlu0 %v218, 8
  %v220 = vpop.permute.xlu0 %219
  %221 = vrot.lane.b32.xlu0 %v217, 8
  %v222 = vpop.permute.xlu0 %221
  %v225 = vrot.slane %v178, 2
  %v226 = vrot.slane %v183, 2
  %v227 = vsel %vm198, %v225, %v226
  %228 = vrot.lane.b32.xlu0 %v227, 16
  %v229 = vpop.permute.xlu0 %228
  %230 = vrot.lane.b32.xlu0 %v226, 16
  %v231 = vpop.permute.xlu0 %230
  %v234 = vsel %vm208, %v178, %v220
  %v235 = vsel %vm208, %v183, %v222
  %v236 = vsel %vm211, %v234, %v229
  %v237 = vsel %vm211, %v235, %v231
  %v240 = vrot.slane %v236, 2
  %v241 = vrot.slane %v237, 2
  %v242 = vsel %vm198, %v240, %v241
  %v244 = vsel %vm198, %v213, %v240
  %v245 = vld [vmem:[%s2] sm:$0xff]
  %v246 = vld [vmem:[%s2 + $0x8] sm:$0xff]
  %v247 = vld [vmem:[%s2 + $0x10] sm:$0xff]
  %v248 = vld [vmem:[%s3] sm:$0x1]
  %v250 = vlaneseq
  %v251 = vshrl.u32 %v250, 7
  %v252 = vsub.s32 0, %v251
  %v253 = vrot.slane %v248, %v252
  %vm255 = vcmask 195584
  %v257 = vsel %vm255, %v212, 0
  %v260 = vsel %vm255, %v244, 0
  %v262 = vsel %vm255, %v242, 0
  %v264 = vsel %vm255, %v241, 0
  %266 = vmatprep.subr.mxu0 0.0
  %267 = vmatpush1.msra.mxu0 %v245
  %268 = vmatprep.subr.mxu0 0.0
  %269 = vmatpush1.msra.mxu0 %v246
  %270 = vmatprep.subr.mxu0 0.0
  %271 = vmatpush1.msra.mxu0 %v247
  %272 = vmatprep.subr.mxu0 0.0
  %273 = vmatpush1.msra.mxu0 0.0
  %274 = vmatprep.subr.mxu0 0.0
  %275 = vmatpush1.msra.mxu0 0.0
  %276 = vmatprep.subr.mxu0 0.0
  %277 = vmatpush1.msra.mxu0 0.0
  %278 = vmatprep.subr.mxu0 0.0
  %279 = vmatpush1.msra.mxu0 0.0
  %280 = vmatprep.subr.mxu0 0.0
  %281 = vmatpush1.msra.mxu0 0.0
  %282 = vmatprep.subr.mxu0 0.0
  %283 = vmatpush1.msra.mxu0 0.0
  %284 = vmatprep.subr.mxu0 0.0
  %285 = vmatpush1.msra.mxu0 0.0
  %286 = vmatprep.subr.mxu0 0.0
  %287 = vmatpush1.msra.mxu0 0.0
  %288 = vmatprep.subr.mxu0 0.0
  %289 = vmatpush1.msra.mxu0 0.0
  %290 = vmatprep.subr.mxu0 0.0
  %291 = vmatpush1.msra.mxu0 0.0
  %292 = vmatprep.subr.mxu0 0.0
  %293 = vmatpush1.msra.mxu0 0.0
  %294 = vmatprep.subr.mxu0 0.0
  %295 = vmatpush1.msra.mxu0 0.0
  %296 = vmatprep.subr.mxu0 0.0
  %297 = vmatpush1.msra.mxu0 0.0
  %298 = vmatprep.subr.mxu0 0.0
  %299 = vmatpush1.msra.mxu0 0.0
  %300 = vmatprep.subr.mxu0 0.0
  %301 = vmatpush1.msra.mxu0 0.0
  %302 = vmatprep.subr.mxu0 0.0
  %303 = vmatpush1.msra.mxu0 0.0
  %304 = vmatprep.subr.mxu0 0.0
  %305 = vmatpush1.msra.mxu0 0.0
  %306 = vmatprep.subr.mxu0 0.0
  %307 = vmatpush1.msra.mxu0 0.0
  %308 = vmatprep.subr.mxu0 0.0
  %309 = vmatpush1.msra.mxu0 0.0
  %310 = vmatprep.subr.mxu0 0.0
  %311 = vmatpush1.msra.mxu0 0.0
  %312 = vmatprep.subr.mxu0 0.0
  %313 = vmatpush1.msra.mxu0 0.0
  %314 = vmatprep.subr.mxu0 0.0
  %315 = vmatpush1.msra.mxu0 0.0
  %316 = vmatprep.subr.mxu0 0.0
  %317 = vmatpush1.msra.mxu0 0.0
  %318 = vmatprep.subr.mxu0 0.0
  %319 = vmatpush1.msra.mxu0 0.0
  %320 = vmatprep.subr.mxu0 0.0
  %321 = vmatpush1.msra.mxu0 0.0
  %322 = vmatprep.subr.mxu0 0.0
  %323 = vmatpush1.msra.mxu0 0.0
  %324 = vmatprep.subr.mxu0 0.0
  %325 = vmatpush1.msra.mxu0 0.0
  %326 = vmatprep.subr.mxu0 0.0
  %327 = vmatpush1.msra.mxu0 0.0
  %328 = vmatprep.subr.mxu0 0.0
  %329 = vmatpush1.msra.mxu0 0.0
  %330 = vmatprep.mubr.f32.mxu0 0.0
  %331 = vmatmul.mubr.f32.gmra.mrb[0].mxu0 %v257
  %v332 = vpop.f32.mrb[0].mxu0
  %v333 = vadd.f32 %v253, %v332
  %v334 = vpop.f32.mrb[0].mxu0
  %335 = vmatprep.mubr.f32.mxu0 0.0
  %336 = vmatmul.mubr.f32.gmra.mrb[0].mxu0 %v260
  %v337 = vpop.f32.mrb[0].mxu0
  %v338 = vadd.f32 %v253, %v337
  %v339 = vpop.f32.mrb[0].mxu0
  %340 = vmatprep.mubr.f32.mxu0 0.0
  %341 = vmatmul.mubr.f32.gmra.mrb[0].mxu0 %v262
  %v342 = vpop.f32.mrb[0].mxu0
  %v343 = vadd.f32 %v253, %v342
  %v344 = vpop.f32.mrb[0].mxu0
  %345 = vmatprep.mubr.f32.mxu0 0.0
  %346 = vmatmul.mubr.f32.gmra.mrb[0].mxu0 %v264
  %v347 = vpop.f32.mrb[0].mxu0
  %v348 = vadd.f32 %v253, %v347
  %v349 = vpop.f32.mrb[0].mxu0
  %350 = vdwg.mxu0
  %v351 = vsel %vm208, %v333, -inf
  %vm352 = vcmask 62464
  %v353 = vsel %vm352, %v338, -inf
  %v354 = vmax.f32 %v351, %v353
  %v355 = vrot.slane %v354, 4
  %v356 = vmax.f32 %v354, %v355
  %v357 = vrot.slane %v356, 2
  %v358 = vmax.f32 %v356, %v357
  %v359 = vrot.slane %v358, 1
  %v360 = vmax.f32 %v358, %v359
  %vm361 = vcmask 64518
  %v362 = vsel %vm361, %v338, -inf
  %v363 = vsel %vm208, %v343, -inf
  %vm364 = vcmask 60416
  %v365 = vsel %vm364, %v348, -inf
  %v366 = vmax.f32 %v362, %v363
  %v367 = vmax.f32 %v366, %v365
  %v368 = vrot.slane %v367, 4
  %v369 = vmax.f32 %v367, %v368
  %v370 = vrot.slane %v369, 2
  %v371 = vmax.f32 %v369, %v370
  %v372 = vrot.slane %v371, 1
  %v373 = vmax.f32 %v371, %v372
  %vm374 = vcmask 1040384
  %v375 = vsel %vm374, %v360, %v373
  %v376 = vld [vmem:[%s4] sm:$0xff]
  %v377 = vld [vmem:[%s5] sm:$0x1]
  %v379 = vlaneseq
  %v380 = vshrl.u32 %v379, 7
  %v381 = vsub.s32 0, %v380
  %v382 = vrot.slane %v377, %v381
  %v385 = vsel %vm208, %v375, 0
  %387 = vmatprep.subr.mxu0 0.0
  %388 = vmatpush1.msra.mxu0 %v376
  %389 = vmatprep.subr.mxu0 0.0
  %390 = vmatpush1.msra.mxu0 0.0
  %391 = vmatprep.subr.mxu0 0.0
  %392 = vmatpush1.msra.mxu0 0.0
  %393 = vmatprep.subr.mxu0 0.0
  %394 = vmatpush1.msra.mxu0 0.0
  %395 = vmatprep.subr.mxu0 0.0
  %396 = vmatpush1.msra.mxu0 0.0
  %397 = vmatprep.subr.mxu0 0.0
  %398 = vmatpush1.msra.mxu0 0.0
  %399 = vmatprep.subr.mxu0 0.0
  %400 = vmatpush1.msra.mxu0 0.0
  %401 = vmatprep.subr.mxu0 0.0
  %402 = vmatpush1.msra.mxu0 0.0
  %403 = vmatprep.subr.mxu0 0.0
  %404 = vmatpush1.msra.mxu0 0.0
  %405 = vmatprep.subr.mxu0 0.0
  %406 = vmatpush1.msra.mxu0 0.0
  %407 = vmatprep.subr.mxu0 0.0
  %408 = vmatpush1.msra.mxu0 0.0
  %409 = vmatprep.subr.mxu0 0.0
  %410 = vmatpush1.msra.mxu0 0.0
  %411 = vmatprep.subr.mxu0 0.0
  %412 = vmatpush1.msra.mxu0 0.0
  %413 = vmatprep.subr.mxu0 0.0
  %414 = vmatpush1.msra.mxu0 0.0
  %415 = vmatprep.subr.mxu0 0.0
  %416 = vmatpush1.msra.mxu0 0.0
  %417 = vmatprep.subr.mxu0 0.0
  %418 = vmatpush1.msra.mxu0 0.0
  %419 = vmatprep.subr.mxu0 0.0
  %420 = vmatpush1.msra.mxu0 0.0
  %421 = vmatprep.subr.mxu0 0.0
  %422 = vmatpush1.msra.mxu0 0.0
  %423 = vmatprep.subr.mxu0 0.0
  %424 = vmatpush1.msra.mxu0 0.0
  %425 = vmatprep.subr.mxu0 0.0
  %426 = vmatpush1.msra.mxu0 0.0
  %427 = vmatprep.subr.mxu0 0.0
  %428 = vmatpush1.msra.mxu0 0.0
  %429 = vmatprep.subr.mxu0 0.0
  %430 = vmatpush1.msra.mxu0 0.0
  %431 = vmatprep.subr.mxu0 0.0
  %432 = vmatpush1.msra.mxu0 0.0
  %433 = vmatprep.subr.mxu0 0.0
  %434 = vmatpush1.msra.mxu0 0.0
  %435 = vmatprep.subr.mxu0 0.0
  %436 = vmatpush1.msra.mxu0 0.0
  %437 = vmatprep.subr.mxu0 0.0
  %438 = vmatpush1.msra.mxu0 0.0
  %439 = vmatprep.subr.mxu0 0.0
  %440 = vmatpush1.msra.mxu0 0.0
  %441 = vmatprep.subr.mxu0 0.0
  %442 = vmatpush1.msra.mxu0 0.0
  %443 = vmatprep.subr.mxu0 0.0
  %444 = vmatpush1.msra.mxu0 0.0
  %445 = vmatprep.subr.mxu0 0.0
  %446 = vmatpush1.msra.mxu0 0.0
  %447 = vmatprep.subr.mxu0 0.0
  %448 = vmatpush1.msra.mxu0 0.0
  %449 = vmatprep.subr.mxu0 0.0
  %450 = vmatpush1.msra.mxu0 0.0
  %451 = vmatprep.mubr.f32.mxu0 0.0
  %452 = vmatmul.mubr.f32.gmra.mrb[0].mxu0 %v385
  %v453 = vpop.f32.mrb[0].mxu0
  %v454 = vadd.f32 %v382, %v453
  %v455 = vpop.f32.mrb[0].mxu0
  %456 = vdwg.mxu0
  %v457 = vld [vmem:[%s6] sm:$0xff]
  %v458 = vld [vmem:[%s6 + $0x8] sm:$0xff]
  %v459 = vld [vmem:[%s7] sm:$0x1]
  %v461 = vlaneseq
  %v462 = vshrl.u32 %v461, 7
  %v463 = vsub.s32 0, %v462
  %v464 = vrot.slane %v459, %v463
  %v467 = vsel %vm211, %v454, 0
  %469 = vmatprep.subr.mxu0 0.0
  %470 = vmatpush1.msra.mxu0 %v457
  %471 = vmatprep.subr.mxu0 0.0
  %472 = vmatpush1.msra.mxu0 %v458
  %473 = vmatprep.subr.mxu0 0.0
  %474 = vmatpush1.msra.mxu0 0.0
  %475 = vmatprep.subr.mxu0 0.0
  %476 = vmatpush1.msra.mxu0 0.0
  %477 = vmatprep.subr.mxu0 0.0
  %478 = vmatpush1.msra.mxu0 0.0
  %479 = vmatprep.subr.mxu0 0.0
  %480 = vmatpush1.msra.mxu0 0.0
  %481 = vmatprep.subr.mxu0 0.0
  %482 = vmatpush1.msra.mxu0 0.0
  %483 = vmatprep.subr.mxu0 0.0
  %484 = vmatpush1.msra.mxu0 0.0
  %485 = vmatprep.subr.mxu0 0.0
  %486 = vmatpush1.msra.mxu0 0.0
  %487 = vmatprep.subr.mxu0 0.0
  %488 = vmatpush1.msra.mxu0 0.0
  %489 = vmatprep.subr.mxu0 0.0
  %490 = vmatpush1.msra.mxu0 0.0
  %491 = vmatprep.subr.mxu0 0.0
  %492 = vmatpush1.msra.mxu0 0.0
  %493 = vmatprep.subr.mxu0 0.0
  %494 = vmatpush1.msra.mxu0 0.0
  %495 = vmatprep.subr.mxu0 0.0
  %496 = vmatpush1.msra.mxu0 0.0
  %497 = vmatprep.subr.mxu0 0.0
  %498 = vmatpush1.msra.mxu0 0.0
  %499 = vmatprep.subr.mxu0 0.0
  %500 = vmatpush1.msra.mxu0 0.0
  %501 = vmatprep.subr.mxu0 0.0
  %502 = vmatpush1.msra.mxu0 0.0
  %503 = vmatprep.subr.mxu0 0.0
  %504 = vmatpush1.msra.mxu0 0.0
  %505 = vmatprep.subr.mxu0 0.0
  %506 = vmatpush1.msra.mxu0 0.0
  %507 = vmatprep.subr.mxu0 0.0
  %508 = vmatpush1.msra.mxu0 0.0
  %509 = vmatprep.subr.mxu0 0.0
  %510 = vmatpush1.msra.mxu0 0.0
  %511 = vmatprep.subr.mxu0 0.0
  %512 = vmatpush1.msra.mxu0 0.0
  %513 = vmatprep.subr.mxu0 0.0
  %514 = vmatpush1.msra.mxu0 0.0
  %515 = vmatprep.subr.mxu0 0.0
  %516 = vmatpush1.msra.mxu0 0.0
  %517 = vmatprep.subr.mxu0 0.0
  %518 = vmatpush1.msra.mxu0 0.0
  %519 = vmatprep.subr.mxu0 0.0
  %520 = vmatpush1.msra.mxu0 0.0
  %521 = vmatprep.subr.mxu0 0.0
  %522 = vmatpush1.msra.mxu0 0.0
  %523 = vmatprep.subr.mxu0 0.0
  %524 = vmatpush1.msra.mxu0 0.0
  %525 = vmatprep.subr.mxu0 0.0
  %526 = vmatpush1.msra.mxu0 0.0
  %527 = vmatprep.subr.mxu0 0.0
  %528 = vmatpush1.msra.mxu0 0.0
  %529 = vmatprep.subr.mxu0 0.0
  %530 = vmatpush1.msra.mxu0 0.0
  %531 = vmatprep.subr.mxu0 0.0
  %532 = vmatpush1.msra.mxu0 0.0
  %533 = vmatprep.mubr.f32.mxu0 0.0
  %534 = vmatmul.mubr.f32.gmra.mrb[0].mxu0 %v467
  %v535 = vpop.f32.mrb[0].mxu0
  %v536 = vadd.f32 %v464, %v535
  %v537 = vpop.f32.mrb[0].mxu0
  %538 = vdwg.mxu0
  %540 = vrot.lane.b32.xlu0 %v536, 127
  %v541 = vpop.permute.xlu0 %540
  %v543 = vrot.slane %v536, 1
  %544 = vrot.lane.b32.xlu0 %v543, 7
  %v545 = vpop.permute.xlu0 %544
  %v547 = vsel %vm208, %v541, %v545
  %v548 = vld [vmem:[%s8] sm:$0xff]
  %v549 = vld [vmem:[%s8 + $0x8] sm:$0x3]
  %v550 = vld [vmem:[%s9] sm:$0xff]
  %v551 = vld [vmem:[%s9 + $0x8] sm:$0x3]
  %553 = vset.pattern.permute.xlu0 0
  %554 = vperm.xlu0 %553, %v550
  %v555 = vpop.permute.xlu0 %554
  %558 = vset.pattern.permute.xlu0 0
  %559 = vperm.xlu0 %558, %v551
  %v560 = vpop.permute.xlu0 %559
  %vm562 = vcmask 7168
  %v564 = vsel %vm562, %v548, 0
  %v567 = vsel %vm562, %v549, 0
  %v570 = vsel %vm374, %v547, 0
  %572 = vmatprep.subr.mxu0 0.0
  %573 = vmatpush1.msra.mxu0 %v570
  %574 = vmatprep.subr.mxu0 0.0
  %575 = vmatpush1.msra.mxu0 0.0
  %576 = vmatprep.subr.mxu0 0.0
  %577 = vmatpush1.msra.mxu0 0.0
  %578 = vmatprep.subr.mxu0 0.0
  %579 = vmatpush1.msra.mxu0 0.0
  %580 = vmatprep.subr.mxu0 0.0
  %581 = vmatpush1.msra.mxu0 0.0
  %582 = vmatprep.subr.mxu0 0.0
  %583 = vmatpush1.msra.mxu0 0.0
  %584 = vmatprep.subr.mxu0 0.0
  %585 = vmatpush1.msra.mxu0 0.0
  %586 = vmatprep.subr.mxu0 0.0
  %587 = vmatpush1.msra.mxu0 0.0
  %588 = vmatprep.subr.mxu0 0.0
  %589 = vmatpush1.msra.mxu0 0.0
  %590 = vmatprep.subr.mxu0 0.0
  %591 = vmatpush1.msra.mxu0 0.0
  %592 = vmatprep.subr.mxu0 0.0
  %593 = vmatpush1.msra.mxu0 0.0
  %594 = vmatprep.subr.mxu0 0.0
  %595 = vmatpush1.msra.mxu0 0.0
  %596 = vmatprep.subr.mxu0 0.0
  %597 = vmatpush1.msra.mxu0 0.0
  %598 = vmatprep.subr.mxu0 0.0
  %599 = vmatpush1.msra.mxu0 0.0
  %600 = vmatprep.subr.mxu0 0.0
  %601 = vmatpush1.msra.mxu0 0.0
  %602 = vmatprep.subr.mxu0 0.0
  %603 = vmatpush1.msra.mxu0 0.0
  %604 = vmatprep.subr.mxu0 0.0
  %605 = vmatpush1.msra.mxu0 0.0
  %606 = vmatprep.subr.mxu0 0.0
  %607 = vmatpush1.msra.mxu0 0.0
  %608 = vmatprep.subr.mxu0 0.0
  %609 = vmatpush1.msra.mxu0 0.0
  %610 = vmatprep.subr.mxu0 0.0
  %611 = vmatpush1.msra.mxu0 0.0
  %612 = vmatprep.subr.mxu0 0.0
  %613 = vmatpush1.msra.mxu0 0.0
  %614 = vmatprep.subr.mxu0 0.0
  %615 = vmatpush1.msra.mxu0 0.0
  %616 = vmatprep.subr.mxu0 0.0
  %617 = vmatpush1.msra.mxu0 0.0
  %618 = vmatprep.subr.mxu0 0.0
  %619 = vmatpush1.msra.mxu0 0.0
  %620 = vmatprep.subr.mxu0 0.0
  %621 = vmatpush1.msra.mxu0 0.0
  %622 = vmatprep.subr.mxu0 0.0
  %623 = vmatpush1.msra.mxu0 0.0
  %624 = vmatprep.subr.mxu0 0.0
  %625 = vmatpush1.msra.mxu0 0.0
  %626 = vmatprep.subr.mxu0 0.0
  %627 = vmatpush1.msra.mxu0 0.0
  %628 = vmatprep.subr.mxu0 0.0
  %629 = vmatpush1.msra.mxu0 0.0
  %630 = vmatprep.subr.mxu0 0.0
  %631 = vmatpush1.msra.mxu0 0.0
  %632 = vmatprep.subr.mxu0 0.0
  %633 = vmatpush1.msra.mxu0 0.0
  %634 = vmatprep.subr.mxu0 0.0
  %635 = vmatpush1.msra.mxu0 0.0
  %636 = vmatprep.mubr.f32.mxu0 0.0
  %637 = vmatmul.mubr.f32.gmra.mrb[0].mxu0 %v564
  %v638 = vpop.f32.mrb[0].mxu0
  %v639 = vadd.f32 %v555, %v638
  %v640 = vpop.f32.mrb[0].mxu0
  %641 = vmatprep.mubr.f32.mxu0 0.0
  %642 = vmatmul.mubr.f32.gmra.mrb[0].mxu0 %v567
  %v643 = vpop.f32.mrb[0].mxu0
  %v644 = vadd.f32 %v560, %v643
  %v645 = vpop.f32.mrb[0].mxu0
  %646 = vdwg.mxu0
  %v647 = vmax.f32 %v639, 0.0
  %v648 = vmax.f32 %v644, 0.0
  %v651 = vrot.slane %v647, 1
  %v652 = vrot.slane %v648, 1
  %v653 = vsel %vm188, %v651, %v652
  %654 = vrot.lane.b32.xlu0 %v653, 8
  %v655 = vpop.permute.xlu0 %654
  %v657 = vrot.slane %v647, 2
  %v658 = vrot.slane %v648, 2
  %v659 = vsel %vm198, %v657, %v658
  %660 = vrot.lane.b32.xlu0 %v659, 16
  %v661 = vpop.permute.xlu0 %660
  %v663 = vsel %vm208, %v647, %v655
  %v664 = vsel %vm211, %v663, %v661
  %665 = vrot.lane.b32.xlu0 %v647, 120
  %v666 = vpop.permute.xlu0 %665
  %669 = vrot.lane.b32.xlu0 %v659, 8
  %v670 = vpop.permute.xlu0 %669
  %v672 = vsel %vm208, %v666, %v653
  %v673 = vsel %vm211, %v672, %v670
  %v674 = vld [vmem:[%s10] sm:$0xff]
  %v675 = vld [vmem:[%s10 + $0x8] sm:$0xff]
  %v676 = vld [vmem:[%s10 + $0x10] sm:$0xff]
  %v677 = vld [vmem:[%s11] sm:$0x1]
  %v679 = vlaneseq
  %v680 = vshrl.u32 %v679, 7
  %v681 = vsub.s32 0, %v680
  %v682 = vrot.slane %v677, %v681
  %v685 = vsel %vm255, %v664, 0
  %v688 = vsel %vm255, %v673, 0
  %690 = vmatprep.subr.mxu0 0.0
  %691 = vmatpush1.msra.mxu0 %v674
  %692 = vmatprep.subr.mxu0 0.0
  %693 = vmatpush1.msra.mxu0 %v675
  %694 = vmatprep.subr.mxu0 0.0
  %695 = vmatpush1.msra.mxu0 %v676
  %696 = vmatprep.subr.mxu0 0.0
  %697 = vmatpush1.msra.mxu0 0.0
  %698 = vmatprep.subr.mxu0 0.0
  %699 = vmatpush1.msra.mxu0 0.0
  %700 = vmatprep.subr.mxu0 0.0
  %701 = vmatpush1.msra.mxu0 0.0
  %702 = vmatprep.subr.mxu0 0.0
  %703 = vmatpush1.msra.mxu0 0.0
  %704 = vmatprep.subr.mxu0 0.0
  %705 = vmatpush1.msra.mxu0 0.0
  %706 = vmatprep.subr.mxu0 0.0
  %707 = vmatpush1.msra.mxu0 0.0
  %708 = vmatprep.subr.mxu0 0.0
  %709 = vmatpush1.msra.mxu0 0.0
  %710 = vmatprep.subr.mxu0 0.0
  %711 = vmatpush1.msra.mxu0 0.0
  %712 = vmatprep.subr.mxu0 0.0
  %713 = vmatpush1.msra.mxu0 0.0
  %714 = vmatprep.subr.mxu0 0.0
  %715 = vmatpush1.msra.mxu0 0.0
  %716 = vmatprep.subr.mxu0 0.0
  %717 = vmatpush1.msra.mxu0 0.0
  %718 = vmatprep.subr.mxu0 0.0
  %719 = vmatpush1.msra.mxu0 0.0
  %720 = vmatprep.subr.mxu0 0.0
  %721 = vmatpush1.msra.mxu0 0.0
  %722 = vmatprep.subr.mxu0 0.0
  %723 = vmatpush1.msra.mxu0 0.0
  %724 = vmatprep.subr.mxu0 0.0
  %725 = vmatpush1.msra.mxu0 0.0
  %726 = vmatprep.subr.mxu0 0.0
  %727 = vmatpush1.msra.mxu0 0.0
  %728 = vmatprep.subr.mxu0 0.0
  %729 = vmatpush1.msra.mxu0 0.0
  %730 = vmatprep.subr.mxu0 0.0
  %731 = vmatpush1.msra.mxu0 0.0
  %732 = vmatprep.subr.mxu0 0.0
  %733 = vmatpush1.msra.mxu0 0.0
  %734 = vmatprep.subr.mxu0 0.0
  %735 = vmatpush1.msra.mxu0 0.0
  %736 = vmatprep.subr.mxu0 0.0
  %737 = vmatpush1.msra.mxu0 0.0
  %738 = vmatprep.subr.mxu0 0.0
  %739 = vmatpush1.msra.mxu0 0.0
  %740 = vmatprep.subr.mxu0 0.0
  %741 = vmatpush1.msra.mxu0 0.0
  %742 = vmatprep.subr.mxu0 0.0
  %743 = vmatpush1.msra.mxu0 0.0
  %744 = vmatprep.subr.mxu0 0.0
  %745 = vmatpush1.msra.mxu0 0.0
  %746 = vmatprep.subr.mxu0 0.0
  %747 = vmatpush1.msra.mxu0 0.0
  %748 = vmatprep.subr.mxu0 0.0
  %749 = vmatpush1.msra.mxu0 0.0
  %750 = vmatprep.subr.mxu0 0.0
  %751 = vmatpush1.msra.mxu0 0.0
  %752 = vmatprep.subr.mxu0 0.0
  %753 = vmatpush1.msra.mxu0 0.0
  %754 = vmatprep.mubr.f32.mxu0 0.0
  %755 = vmatmul.mubr.f32.gmra.mrb[0].mxu0 %v685
  %v756 = vpop.f32.mrb[0].mxu0
  %v757 = vadd.f32 %v682, %v756
  %v758 = vpop.f32.mrb[0].mxu0
  %759 = vmatprep.mubr.f32.mxu0 0.0
  %760 = vmatmul.mubr.f32.gmra.mrb[0].mxu0 %v688
  %v761 = vpop.f32.mrb[0].mxu0
  %v762 = vadd.f32 %v682, %v761
  %v763 = vpop.f32.mrb[0].mxu0
  %764 = vdwg.mxu0
  %v765 = vld [vmem:[%s12] sm:$0xff]
  %v766 = vld [vmem:[%s13] sm:$0x1]
  %v768 = vlaneseq
  %v769 = vshrl.u32 %v768, 7
  %v770 = vsub.s32 0, %v769
  %v771 = vrot.slane %v766, %v770
  %v774 = vsel %vm208, %v757, 0
  %v777 = vsel %vm208, %v762, 0
  %779 = vmatprep.subr.mxu0 0.0
  %780 = vmatpush1.msra.mxu0 %v765
  %781 = vmatprep.subr.mxu0 0.0
  %782 = vmatpush1.msra.mxu0 0.0
  %783 = vmatprep.subr.mxu0 0.0
  %784 = vmatpush1.msra.mxu0 0.0
  %785 = vmatprep.subr.mxu0 0.0
  %786 = vmatpush1.msra.mxu0 0.0
  %787 = vmatprep.subr.mxu0 0.0
  %788 = vmatpush1.msra.mxu0 0.0
  %789 = vmatprep.subr.mxu0 0.0
  %790 = vmatpush1.msra.mxu0 0.0
  %791 = vmatprep.subr.mxu0 0.0
  %792 = vmatpush1.msra.mxu0 0.0
  %793 = vmatprep.subr.mxu0 0.0
  %794 = vmatpush1.msra.mxu0 0.0
  %795 = vmatprep.subr.mxu0 0.0
  %796 = vmatpush1.msra.mxu0 0.0
  %797 = vmatprep.subr.mxu0 0.0
  %798 = vmatpush1.msra.mxu0 0.0
  %799 = vmatprep.subr.mxu0 0.0
  %800 = vmatpush1.msra.mxu0 0.0
  %801 = vmatprep.subr.mxu0 0.0
  %802 = vmatpush1.msra.mxu0 0.0
  %803 = vmatprep.subr.mxu0 0.0
  %804 = vmatpush1.msra.mxu0 0.0
  %805 = vmatprep.subr.mxu0 0.0
  %806 = vmatpush1.msra.mxu0 0.0
  %807 = vmatprep.subr.mxu0 0.0
  %808 = vmatpush1.msra.mxu0 0.0
  %809 = vmatprep.subr.mxu0 0.0
  %810 = vmatpush1.msra.mxu0 0.0
  %811 = vmatprep.subr.mxu0 0.0
  %812 = vmatpush1.msra.mxu0 0.0
  %813 = vmatprep.subr.mxu0 0.0
  %814 = vmatpush1.msra.mxu0 0.0
  %815 = vmatprep.subr.mxu0 0.0
  %816 = vmatpush1.msra.mxu0 0.0
  %817 = vmatprep.subr.mxu0 0.0
  %818 = vmatpush1.msra.mxu0 0.0
  %819 = vmatprep.subr.mxu0 0.0
  %820 = vmatpush1.msra.mxu0 0.0
  %821 = vmatprep.subr.mxu0 0.0
  %822 = vmatpush1.msra.mxu0 0.0
  %823 = vmatprep.subr.mxu0 0.0
  %824 = vmatpush1.msra.mxu0 0.0
  %825 = vmatprep.subr.mxu0 0.0
  %826 = vmatpush1.msra.mxu0 0.0
  %827 = vmatprep.subr.mxu0 0.0
  %828 = vmatpush1.msra.mxu0 0.0
  %829 = vmatprep.subr.mxu0 0.0
  %830 = vmatpush1.msra.mxu0 0.0
  %831 = vmatprep.subr.mxu0 0.0
  %832 = vmatpush1.msra.mxu0 0.0
  %833 = vmatprep.subr.mxu0 0.0
  %834 = vmatpush1.msra.mxu0 0.0
  %835 = vmatprep.subr.mxu0 0.0
  %836 = vmatpush1.msra.mxu0 0.0
  %837 = vmatprep.subr.mxu0 0.0
  %838 = vmatpush1.msra.mxu0 0.0
  %839 = vmatprep.subr.mxu0 0.0
  %840 = vmatpush1.msra.mxu0 0.0
  %841 = vmatprep.subr.mxu0 0.0
  %842 = vmatpush1.msra.mxu0 0.0
  %843 = vmatprep.mubr.f32.mxu0 0.0
  %844 = vmatmul.mubr.f32.gmra.mrb[0].mxu0 %v774
  %v845 = vpop.f32.mrb[0].mxu0
  %v846 = vadd.f32 %v771, %v845
  %v847 = vpop.f32.mrb[0].mxu0
  %848 = vmatprep.mubr.f32.mxu0 0.0
  %849 = vmatmul.mubr.f32.gmra.mrb[0].mxu0 %v777
  %v850 = vpop.f32.mrb[0].mxu0
  %v851 = vadd.f32 %v771, %v850
  %v852 = vpop.f32.mrb[0].mxu0
  %853 = vdwg.mxu0
  %v855 = vrot.slane %v846, 1
  %856 = vrot.lane.b32.xlu0 %v855, 16
  %v857 = vpop.permute.xlu0 %856
  %v859 = vrot.slane %v846, 2
  %860 = vrot.lane.b32.xlu0 %v859, 32
  %v861 = vpop.permute.xlu0 %860
  %v863 = vrot.slane %v846, 3
  %864 = vrot.lane.b32.xlu0 %v863, 48
  %v865 = vpop.permute.xlu0 %864
  %v867 = vrot.slane %v846, 4
  %868 = vrot.lane.b32.xlu0 %v867, 64
  %v869 = vpop.permute.xlu0 %868
  %v871 = vrot.slane %v846, 5
  %872 = vrot.lane.b32.xlu0 %v871, 80
  %v873 = vpop.permute.xlu0 %872
  %v875 = vrot.slane %v846, 6
  %876 = vrot.lane.b32.xlu0 %v875, 96
  %v877 = vpop.permute.xlu0 %876
  %v879 = vrot.slane %v846, 7
  %880 = vrot.lane.b32.xlu0 %v879, 112
  %v881 = vpop.permute.xlu0 %880
  %v883 = vsel %vm211, %v846, %v857
  %vm884 = vcmask 261120
  %v885 = vsel %vm884, %v883, %v861
  %vm886 = vcmask 392192
  %v887 = vsel %vm886, %v885, %v865
  %vm888 = vcmask 523264
  %v889 = vsel %vm888, %v887, %v869
  %vm890 = vcmask 654336
  %v891 = vsel %vm890, %v889, %v873
  %vm892 = vcmask 785408
  %v893 = vsel %vm892, %v891, %v877
  %vm894 = vcmask 916480
  %v895 = vsel %vm894, %v893, %v881
  %v896 = vsel %vm562, %v536, 0.0
  %v898 = vrot.slane %v851, 1
  %899 = vrot.lane.b32.xlu0 %v898, 16
  %v900 = vpop.permute.xlu0 %899
  %v902 = vrot.slane %v851, 2
  %903 = vrot.lane.b32.xlu0 %v902, 32
  %v904 = vpop.permute.xlu0 %903
  %v906 = vrot.slane %v851, 3
  %907 = vrot.lane.b32.xlu0 %v906, 48
  %v908 = vpop.permute.xlu0 %907
  %v910 = vrot.slane %v851, 4
  %911 = vrot.lane.b32.xlu0 %v910, 64
  %v912 = vpop.permute.xlu0 %911
  %v914 = vrot.slane %v851, 5
  %915 = vrot.lane.b32.xlu0 %v914, 80
  %v916 = vpop.permute.xlu0 %915
  %v918 = vrot.slane %v851, 6
  %919 = vrot.lane.b32.xlu0 %v918, 96
  %v920 = vpop.permute.xlu0 %919
  %v922 = vrot.slane %v851, 7
  %923 = vrot.lane.b32.xlu0 %v922, 112
  %v924 = vpop.permute.xlu0 %923
  %v926 = vsel %vm211, %v851, %v900
  %v927 = vsel %vm884, %v926, %v904
  %v928 = vsel %vm886, %v927, %v908
  %v929 = vsel %vm888, %v928, %v912
  %v930 = vsel %vm890, %v929, %v916
  %v931 = vsel %vm892, %v930, %v920
  %v932 = vsel %vm894, %v931, %v924
  %v934 = vrot.slane %v896, 1
  %v936 = vrot.slane %v932, 7
  %v937 = vrot.slane %v934, 7
  %v940 = vsel %vm374, %v895, %v936
  %v941 = vsel %vm374, %v896, %v937
  %v944 = vcombine.low %v940, %v941
  %v946 = vunpack.c.l.s4 1983009808
  %v947 = vunpack.c.0.s8 %v946
  %v948 = vlaneseq
  %v949 = vshrl.u32 %v948, 7
  %v950 = vsub.s32 %v947, %v949
  %v951 = vrot.slane %v944, %v950
  %953 = vst [vmem:[%s14] sm:$0xf] %v951
  // Predicated region
  $region58: #{translator_forward.1} parent=0 // pred_check
    _
  $region59: #{translator_forward.1} parent=0 // pred_check_branch
    %955 = sbr.rel (0) target = $region61
  $region60: #{translator_forward.1} parent=0 // pred_region
    _
  $region61: #{translator_forward.1} parent=0 // pred_fallthru
    _
  // Predicated region
  $region62: #{translator_forward.1} parent=0 // pred_check
    _
  $region63: #{translator_forward.1} parent=0 // pred_check_branch
    %957 = sbr.rel (0) target = $region65
  $region64: #{translator_forward.1} parent=0 // pred_region
    _
  $region65: #{translator_forward.1} parent=0 // pred_fallthru
    _

</llo_original>
